<compile_context>
chip_gen: v7x
topology: tpu7x:2x2x1
jax: 0.10.0
libtpu: 0.0.40
codegen_flags: <defaults>
</compile_context>

<pallas_src>
import functools
import math

import jax
import jax.numpy as jnp
from jax.experimental import pallas as pl
from jax.experimental.pallas import tpu as pltpu

EPS = 1e-5


# ---------------------------------------------------------------------------
# Hardware-generation profile (queried once; conservative fallbacks).
# ---------------------------------------------------------------------------
@functools.lru_cache(maxsize=1)
def _chip_profile():
    """Returns (tile_f32_bytes, vmem_limit_bytes, tc_per_chip)."""
    vmem_phys = None
    try:
        vmem_phys = int(pltpu.get_tpu_info().vmem_capacity_bytes)
    except Exception:
        vmem_phys = None
    kind = ""
    try:
        kind = jax.devices()[0].device_kind.lower()
    except Exception:
        pass
    # v7x: 64 MiB VMEM per TC, 2 TensorCores per chip.  v5e/v6e: 128 MiB, 1 TC.
    is_v7_plus = ("7" in kind) or (vmem_phys is not None and vmem_phys <= (64 << 20))
    if is_v7_plus:
        # ~6 MiB fp32 tile: 2x(in)+2x(out)+f32 temps stays well under 48 MiB.
        return 6 << 20, 48 << 20, 2
    # v5e/v6e: plenty of VMEM; bigger tiles cut per-step overhead to ~3%.
    return 8 << 20, 64 << 20, 1


# ---------------------------------------------------------------------------
# Row-tile sizing.
# ---------------------------------------------------------------------------
def _pick_block_rows(rows, d, itemsize, tile_f32_bytes, tc_per_chip):
    """Sublane-aligned row tile: byte-budget driven, >=2 steps per TensorCore."""
    # Sublane packing of the *input* dtype: f32 -> 8 rows/vreg, bf16 -> 16, int8 -> 32.
    align = max(8, 32 // itemsize)
    if rows <= align:
        return rows  # single full-extent block (equals full array dim: legal)
    # fp32-equivalent budget: the kernel casts to f32 internally, so size the
    # tile as block_rows * d * 4 bytes regardless of the input dtype.
    cap = max(align, (tile_f32_bytes // (d * 4)) // align * align)
    # Target step count: at least 2 pipelined steps per TensorCore, rounded up
    # to a multiple of the core count so a 2-TC chip gets balanced work.
    min_steps = 2 * tc_per_chip
    n = max(min_steps, -(-rows // cap))          # cdiv(rows, cap)
    if tc_per_chip > 1 and n % tc_per_chip:
        n += tc_per_chip - (n % tc_per_chip)
    br = -(-rows // n)                            # ceil(rows / n)
    br = -(-br // align) * align                  # round up to sublane alignment
    return max(align, min(br, cap))


# ---------------------------------------------------------------------------
# Kernels.
# ---------------------------------------------------------------------------
def _plain_body(x_ref, w_ref, b_ref, o_ref):
    # x_ref: (tm, D); w_ref/b_ref: (1, D); o_ref: (tm, D).  All math in f32.
    x = x_ref[...].astype(jnp.float32)
    mean = jnp.mean(x, axis=-1, keepdims=True)
    xc = x - mean
    var = jnp.mean(xc * xc, axis=-1, keepdims=True)      # biased variance
    y = xc * jax.lax.rsqrt(var + EPS) * w_ref[...].astype(jnp.float32)
    if b_ref is not None:
        y = y + b_ref[...].astype(jnp.float32)
    o_ref[...] = y.astype(o_ref.dtype)


def _ln_plain_bias(x_ref, w_ref, b_ref, o_ref):
    _plain_body(x_ref, w_ref, b_ref, o_ref)


def _ln_plain_nobias(x_ref, w_ref, o_ref):
    _plain_body(x_ref, w_ref, None, o_ref)


def _fold_body(x_ref, w_ref, b_ref, seg_ref, segt_ref, o_ref, inv_d):
    # Lane-dense small-D path: k = 128 // D rows folded into the 128-lane dim.
    # x_ref: (tm, L) with L = k*D = 128; seg: (L, k) segment indicator (f32);
    # segt: (k, L).  Per-row reductions become segment matmuls on the idle MXU.
    x = x_ref[...].astype(jnp.float32)
    seg = seg_ref[...]
    segt = segt_ref[...]
    mean = jnp.dot(x, seg, preferred_element_type=jnp.float32) * inv_d      # (tm, k)
    xc = x - jnp.dot(mean, segt, preferred_element_type=jnp.float32)        # (tm, L)
    var = jnp.dot(xc * xc, seg, preferred_element_type=jnp.float32) * inv_d  # (tm, k)
    inv = jax.lax.rsqrt(var + EPS)                                           # EUP rsqrt
    y = xc * jnp.dot(inv, segt, preferred_element_type=jnp.float32)
    y = y * w_ref[...].astype(jnp.float32)
    if b_ref is not None:
        y = y + b_ref[...].astype(jnp.float32)
    o_ref[...] = y.astype(o_ref.dtype)


def _ln_fold_bias(x_ref, w_ref, b_ref, seg_ref, segt_ref, o_ref, *, inv_d):
    _fold_body(x_ref, w_ref, b_ref, seg_ref, segt_ref, o_ref, inv_d)


def _ln_fold_nobias(x_ref, w_ref, seg_ref, segt_ref, o_ref, *, inv_d):
    _fold_body(x_ref, w_ref, None, seg_ref, segt_ref, o_ref, inv_d)


# ---------------------------------------------------------------------------
# Wrapper.
# ---------------------------------------------------------------------------
@jax.jit
def layer_norm(x, weight, bias=None):
    """LayerNorm over the last dim of x.  weight/bias have shape (D,)."""
    orig_shape = x.shape
    D = orig_shape[-1]
    rows = math.prod(orig_shape[:-1]) if len(orig_shape) > 1 else 1
    x2 = x.reshape(rows, D)
    itemsize = jnp.dtype(x.dtype).itemsize
    has_bias = bias is not None

    tile_f32_bytes, vmem_limit, tc_per_chip = _chip_profile()

    # Lane-dense fold for small feature dims (vreg lane width is 128).
    k = 128 // D if (D < 128 and 128 % D == 0) else 1
    fold = (k > 1) and (rows % k == 0)
    # TODO(synk): D that neither divides 128 nor is a multiple of 128 still
    # uses the plain (lane-masked) path; a general pad-to-128 path could be added.

    const_map = lambda i: (0, 0)

    if fold:
        L = k * D
        rows_eff = rows // k
        x_op = x2.reshape(rows_eff, L)
        w_row = jnp.tile(weight.reshape(1, D), (1, k))            # (1, L)
        lane_seg = jnp.arange(L, dtype=jnp.int32) // D
        seg = (lane_seg[:, None] == jnp.arange(k, dtype=jnp.int32)[None, :]
               ).astype(jnp.float32)                               # (L, k)
        segt = seg.T                                               # (k, L)
        d_eff = L
    else:
        rows_eff = rows
        x_op = x2
        w_row = weight.reshape(1, D)
        d_eff = D

    block_rows = _pick_block_rows(rows_eff, d_eff, itemsize, tile_f32_bytes,
                                  tc_per_chip)
    grid = (pl.cdiv(rows_eff, block_rows),)   # partial tail block masked by Pallas

    x_spec = pl.BlockSpec((block_rows, d_eff), lambda i: (i, 0))
    wb_spec = pl.BlockSpec((1, d_eff), const_map)
    out_spec = pl.BlockSpec((block_rows, d_eff), lambda i: (i, 0))

    if fold:
        seg_spec = pl.BlockSpec((L, k), const_map)
        segt_spec = pl.BlockSpec((k, L), const_map)
        if has_bias:
            b_row = jnp.tile(bias.reshape(1, D), (1, k))
            kernel = functools.partial(_ln_fold_bias, inv_d=1.0 / D)
            operands = (x_op, w_row, b_row, seg, segt)
            in_specs = [x_spec, wb_spec, wb_spec, seg_spec, segt_spec]
        else:
            kernel = functools.partial(_ln_fold_nobias, inv_d=1.0 / D)
            operands = (x_op, w_row, seg, segt)
            in_specs = [x_spec, wb_spec, seg_spec, segt_spec]
    else:
        if has_bias:
            kernel = _ln_plain_bias
            operands = (x_op, w_row, bias.reshape(1, D))
            in_specs = [x_spec, wb_spec, wb_spec]
        else:
            kernel = _ln_plain_nobias
            operands = (x_op, w_row)
            in_specs = [x_spec, wb_spec]

    w_itemsize = jnp.dtype(weight.dtype).itemsize
    cost = pl.CostEstimate(
        flops=9 * rows * D,
        transcendentals=rows,  # one rsqrt per row
        bytes_accessed=2 * rows * D * itemsize
        + (2 if has_bias else 1) * D * w_itemsize,
    )

    out = pl.pallas_call(
        kernel,
        out_shape=jax.ShapeDtypeStruct((rows_eff, d_eff), x.dtype),
        grid_spec=pltpu.PrefetchScalarGridSpec(
            num_scalar_prefetch=0,
            grid=grid,
            in_specs=in_specs,
            out_specs=out_spec,
        ),
        compiler_params=pltpu.CompilerParams(
            dimension_semantics=("parallel",),
            vmem_limit_bytes=vmem_limit,
        ),
        cost_estimate=cost,
    )(*operands)

    return out.reshape(orig_shape)


# ---------------------------------------------------------------------------
# Reference & self-test.
# ---------------------------------------------------------------------------
def _reference(x, weight, bias):
    xf = x.astype(jnp.float32)
    mean = jnp.mean(xf, axis=-1, keepdims=True)
    var = jnp.mean((xf - mean) ** 2, axis=-1, keepdims=True)
    y = (xf - mean) / jnp.sqrt(var + EPS)
    y = y * weight.astype(jnp.float32)
    if bias is not None:
        y = y + bias.astype(jnp.float32)
    return y.astype(x.dtype)


if __name__ == "__main__":
    key = jax.random.PRNGKey(0)
    k1, k2, k3 = jax.random.split(key, 3)

    # Main case: (B, T, D) with bias -> lane-dense folded path (D=32, k=4).
    B, T, D = 2, 8, 32
    x = jax.random.normal(k1, (B, T, D), dtype=jnp.float32)
    weight = jnp.ones((D,), jnp.float32)   # same init as the PyTorch module
    bias = jnp.zeros((D,), jnp.float32)

    out = layer_norm(x, weight, bias)
    jax.block_until_ready(out)
    ref = _reference(x, weight, bias)
    assert out.shape == x.shape and out.dtype == x.dtype
    assert jnp.allclose(out, ref, atol=1e-5, rtol=1e-5)

    # bias=False path (separate kernel variant, no zeros-bias allocation).
    out_nb = layer_norm(x, weight, None)
    jax.block_until_ready(out_nb)
    assert jnp.allclose(out_nb, _reference(x, weight, None), atol=1e-5, rtol=1e-5)

    # Ragged row count (15 rows) -> plain path with masked partial tail block.
    x_odd = jax.random.normal(k2, (3, 5, D), dtype=jnp.float32)
    out_odd = layer_norm(x_odd, weight, bias)
    jax.block_until_ready(out_odd)
    assert jnp.allclose(out_odd, _reference(x_odd, weight, bias), atol=1e-5, rtol=1e-5)

    # Lane-aligned D (plain path, full 128-lane stores) in bf16.
    D2 = 128
    xb = jax.random.normal(k3, (4, 16, D2), dtype=jnp.bfloat16)
    w2 = jnp.ones((D2,), jnp.bfloat16)
    b2 = jnp.zeros((D2,), jnp.bfloat16)
    out_b = layer_norm(xb, w2, b2)
    jax.block_until_ready(out_b)
    ref_b = _reference(xb, w2, b2)
    assert jnp.allclose(out_b.astype(jnp.float32), ref_b.astype(jnp.float32),
                        atol=2e-2, rtol=2e-2)

    print("KERNEL_OK")
</pallas_src>

<mosaic_0001>
module attributes {stable_mosaic.version = 11 : i64} {
  func.func @_ln_fold_bias(%arg0: i32, %arg1: memref<4x128xf32, #tpu.memory_space<vmem>>, %arg2: memref<1x128xf32, #tpu.memory_space<vmem>>, %arg3: memref<1x128xf32, #tpu.memory_space<vmem>>, %arg4: memref<128x4xf32, #tpu.memory_space<vmem>>, %arg5: memref<4x128xf32, #tpu.memory_space<vmem>>, %arg6: memref<4x128xf32, #tpu.memory_space<vmem>>) attributes {dimension_semantics = [#tpu.dimension_semantics<parallel>], iteration_bounds = array<i64: 1>, scalar_prefetch = 0 : i64, scratch_operands = 0 : i64, tpu.core_type = #tpu.core_type<tc>, window_params = [{transform_indices = @transform_0, window_bounds = array<i64: 4, 128>}, {pipeline_mode = #tpu.pipeline_mode<synchronous>, transform_indices = @transform_1, window_bounds = array<i64: 1, 128>}, {pipeline_mode = #tpu.pipeline_mode<synchronous>, transform_indices = @transform_2, window_bounds = array<i64: 1, 128>}, {pipeline_mode = #tpu.pipeline_mode<synchronous>, transform_indices = @transform_3, window_bounds = array<i64: 128, 4>}, {pipeline_mode = #tpu.pipeline_mode<synchronous>, transform_indices = @transform_4, window_bounds = array<i64: 4, 128>}, {transform_indices = @transform_5, window_bounds = array<i64: 4, 128>}]} {
    %c0 = arith.constant 0 : index
    %c0_0 = arith.constant 0 : index
    %0 = vector.load %arg1[%c0, %c0_0] : memref<4x128xf32, #tpu.memory_space<vmem>>, vector<4x128xf32>
    %c0_1 = arith.constant 0 : index
    %c0_2 = arith.constant 0 : index
    %1 = vector.load %arg4[%c0_1, %c0_2] : memref<128x4xf32, #tpu.memory_space<vmem>>, vector<128x4xf32>
    %c0_3 = arith.constant 0 : index
    %c0_4 = arith.constant 0 : index
    %2 = vector.load %arg5[%c0_3, %c0_4] : memref<4x128xf32, #tpu.memory_space<vmem>>, vector<4x128xf32>
    %cst = arith.constant dense<0.000000e+00> : vector<4x4xf32>
    %3 = tpu.matmul %0, %1, %cst {dimension_numbers = #tpu.dot_dimension_numbers<[1], [0], [0], [1], [0, 0, 1, 1], [], []>} : vector<4x128xf32>, vector<128x4xf32>, vector<4x4xf32> -> vector<4x4xf32>
    %cst_5 = arith.constant 3.125000e-02 : f32
    %4 = vector.broadcast %cst_5 : f32 to vector<4x4xf32>
    %5 = arith.mulf %3, %4 : vector<4x4xf32>
    %cst_6 = arith.constant dense<0.000000e+00> : vector<4x128xf32>
    %6 = tpu.matmul %5, %2, %cst_6 {dimension_numbers = #tpu.dot_dimension_numbers<[1], [0], [0], [1], [0, 0, 1, 1], [], []>} : vector<4x4xf32>, vector<4x128xf32>, vector<4x128xf32> -> vector<4x128xf32>
    %7 = arith.subf %0, %6 : vector<4x128xf32>
    %8 = arith.mulf %7, %7 : vector<4x128xf32>
    %cst_7 = arith.constant dense<0.000000e+00> : vector<4x4xf32>
    %9 = tpu.matmul %8, %1, %cst_7 {dimension_numbers = #tpu.dot_dimension_numbers<[1], [0], [0], [1], [0, 0, 1, 1], [], []>} : vector<4x128xf32>, vector<128x4xf32>, vector<4x4xf32> -> vector<4x4xf32>
    %cst_8 = arith.constant 3.125000e-02 : f32
    %10 = vector.broadcast %cst_8 : f32 to vector<4x4xf32>
    %11 = arith.mulf %9, %10 : vector<4x4xf32>
    %cst_9 = arith.constant 9.99999974E-6 : f32
    %12 = vector.broadcast %cst_9 : f32 to vector<4x4xf32>
    %13 = arith.addf %11, %12 : vector<4x4xf32>
    %14 = math.rsqrt %13 : vector<4x4xf32>
    %cst_10 = arith.constant dense<0.000000e+00> : vector<4x128xf32>
    %15 = tpu.matmul %14, %2, %cst_10 {dimension_numbers = #tpu.dot_dimension_numbers<[1], [0], [0], [1], [0, 0, 1, 1], [], []>} : vector<4x4xf32>, vector<4x128xf32>, vector<4x128xf32> -> vector<4x128xf32>
    %16 = arith.mulf %7, %15 : vector<4x128xf32>
    %c0_11 = arith.constant 0 : index
    %c0_12 = arith.constant 0 : index
    %17 = vector.load %arg2[%c0_11, %c0_12] : memref<1x128xf32, #tpu.memory_space<vmem>>, vector<1x128xf32>
    %18 = vector.broadcast %17 : vector<1x128xf32> to vector<4x128xf32>
    %19 = arith.mulf %16, %18 : vector<4x128xf32>
    %c0_13 = arith.constant 0 : index
    %c0_14 = arith.constant 0 : index
    %20 = vector.load %arg3[%c0_13, %c0_14] : memref<1x128xf32, #tpu.memory_space<vmem>>, vector<1x128xf32>
    %21 = vector.broadcast %20 : vector<1x128xf32> to vector<4x128xf32>
    %22 = arith.addf %19, %21 : vector<4x128xf32>
    %c0_15 = arith.constant 0 : index
    %c0_16 = arith.constant 0 : index
    %23 = vector.load %arg6[%c0_15, %c0_16] : memref<4x128xf32, #tpu.memory_space<vmem>>, vector<4x128xf32>
    tpu.vector_store %arg6[%c0_15, %c0_16], %22 {strides = array<i32>} : memref<4x128xf32, #tpu.memory_space<vmem>>, vector<4x128xf32>,
    return
  }
  func.func @transform_0(%arg0: i32) -> (i32, i32) {
    %c0_i32 = arith.constant 0 : i32
    %c0_i32_0 = arith.constant 0 : i32
    return %arg0, %c0_i32 : i32, i32
  }
  func.func @transform_1(%arg0: i32) -> (i32, i32) {
    %c0_i32 = arith.constant 0 : i32
    %c0_i32_0 = arith.constant 0 : i32
    %c0_i32_1 = arith.constant 0 : i32
    return %c0_i32, %c0_i32_0 : i32, i32
  }
  func.func @transform_2(%arg0: i32) -> (i32, i32) {
    %c0_i32 = arith.constant 0 : i32
    %c0_i32_0 = arith.constant 0 : i32
    %c0_i32_1 = arith.constant 0 : i32
    return %c0_i32, %c0_i32_0 : i32, i32
  }
  func.func @transform_3(%arg0: i32) -> (i32, i32) {
    %c0_i32 = arith.constant 0 : i32
    %c0_i32_0 = arith.constant 0 : i32
    %c0_i32_1 = arith.constant 0 : i32
    return %c0_i32, %c0_i32_0 : i32, i32
  }
  func.func @transform_4(%arg0: i32) -> (i32, i32) {
    %c0_i32 = arith.constant 0 : i32
    %c0_i32_0 = arith.constant 0 : i32
    %c0_i32_1 = arith.constant 0 : i32
    return %c0_i32, %c0_i32_0 : i32, i32
  }
  func.func @transform_5(%arg0: i32) -> (i32, i32) {
    %c0_i32 = arith.constant 0 : i32
    %c0_i32_0 = arith.constant 0 : i32
    return %arg0, %c0_i32 : i32, i32
  }
}

</mosaic_0001>

<llo_original>
// kernel: layer_norm.1
$region0: #{layer_norm.1}
  #allocation0 [shape = 'u32[]', space=smem, size = 0x4, offset = 0x4, fixed_abs, tag = 'smem constant byte address 0x4 - core index']
  #allocation1 [shape = 'u32[144,128]{1,0:T(1,128)}', space=vmem, size = 0x12000, scoped, tag = 'internal scratch']
  %s0 = inlined_call_operand.hbm [shape: f32[4,128], index: 0, kind: input, shape index: {}]
  %s1 = inlined_call_operand.hbm [shape: f32[1,128], index: 1, kind: input, shape index: {}]
  %s2 = inlined_call_operand.hbm [shape: f32[1,128], index: 2, kind: input, shape index: {}]
  %s3 = inlined_call_operand.hbm [shape: f32[128,4], index: 3, kind: input, shape index: {}]
  %s4 = inlined_call_operand.hbm [shape: f32[4,128], index: 4, kind: input, shape index: {}]
  %s5 = inlined_call_operand.hbm [shape: f32[4,128], index: 5, kind: output, shape index: {}]
  %s6 = sld [smem:[#allocation0]]
  $region50: #{layer_norm.1} parent=0
    _
  %s8 = ssub.s32 1, %s6
  %s9 = scalar_select 0, %s8, %s6
  $region1: #{layer_norm.1} parent=0
    #allocation2 [shape = 'u8[2048]{0}', space=vmem, size = 0x800, scoped, tag = 'input window, operand 0, single buffered']
    #allocation3 [shape = 's32[1]{0}', space=sflag, size = 0x4, scoped, tag = 'scoped memory for layer_norm.1']
    #allocation4 [shape = 's32[1]{0}', space=sflag, size = 0x4, scoped, tag = 'scoped memory for layer_norm.1']
    #allocation5 [shape = 'u8[512]{0}', space=vmem, size = 0x400, scoped, tag = 'input window, operand 1, single buffered']
    #allocation6 [shape = 's32[1]{0}', space=sflag, size = 0x4, scoped, tag = 'scoped memory for layer_norm.1']
    #allocation7 [shape = 'u8[512]{0}', space=vmem, size = 0x400, scoped, tag = 'input window, operand 2, single buffered']
    #allocation8 [shape = 'u8[65536]{0}', space=vmem, size = 0x10000, scoped, tag = 'input window, operand 3, single buffered']
    #allocation9 [shape = 's32[1]{0}', space=sflag, size = 0x4, scoped, tag = 'scoped memory for layer_norm.1']
    #allocation10 [shape = 'u8[2048]{0}', space=vmem, size = 0x800, scoped, tag = 'input window, operand 4, single buffered']
    #allocation11 [shape = 'u8[2048]{0}', space=vmem, size = 0x800, scoped, tag = 'output window, operand 0, single buffered']
    %10 = vsyncpa [#allocation3], 0
    %11 = vsyncpa [#allocation6], 0
    %12 = vsyncpa [#allocation9], 0
    %13 = vsyncpa [#allocation4], 0
    // Predicated region
    $region2: #{layer_norm.1} parent=1 // pred_check
      _
    $region3: #{layer_norm.1} parent=1 // pred_check_branch
      %15 = sbr.rel (0) target = $region5
    $region4: #{layer_norm.1} parent=1 // pred_region
      %s17 = ssub.s32 64, 64
      %18 = vsyncadd [#allocation3], %s17
      %s20 = sshll.u32 [#allocation2], 4
      %s21 = int_to_ptr.vmem [resolvable:$true] %s20
      %23 = dma.hbm_to_vmem [thread:$0]  %s0, 64, %s21, [#allocation3]
    $region5: #{layer_norm.1} parent=1 // pred_fallthru
      _
    // Predicated region
    $region6: #{layer_norm.1} parent=1 // pred_check
      _
    $region7: #{layer_norm.1} parent=1 // pred_check_branch
      %25 = sbr.rel (0) target = $region9
    $region8: #{layer_norm.1} parent=1 // pred_region
      %s27 = ssub.s32 16, 16
      %28 = vsyncadd [#allocation6], %s27
      %s30 = sshll.u32 [#allocation5], 4
      %s31 = int_to_ptr.vmem [resolvable:$true] %s30
      %33 = dma.hbm_to_vmem [thread:$0]  %s1, 16, %s31, [#allocation6]
    $region9: #{layer_norm.1} parent=1 // pred_fallthru
      _
    // Predicated region
    $region10: #{layer_norm.1} parent=1 // pred_check
      _
    $region11: #{layer_norm.1} parent=1 // pred_check_branch
      %35 = sbr.rel (0) target = $region13
    $region12: #{layer_norm.1} parent=1 // pred_region
      %s37 = ssub.s32 16, 16
      %38 = vsyncadd [#allocation6], %s37
      %s40 = sshll.u32 [#allocation7], 4
      %s41 = int_to_ptr.vmem [resolvable:$true] %s40
      %43 = dma.hbm_to_vmem [thread:$0]  %s2, 16, %s41, [#allocation6]
    $region13: #{layer_norm.1} parent=1 // pred_fallthru
      _
    // Predicated region
    $region14: #{layer_norm.1} parent=1 // pred_check
      _
    $region15: #{layer_norm.1} parent=1 // pred_check_branch
      %45 = sbr.rel (0) target = $region17
    $region16: #{layer_norm.1} parent=1 // pred_region
      %s47 = ssub.s32 2048, 2048
      %48 = vsyncadd [#allocation9], %s47
      %s49 = sshll.u32 [#allocation8], 4
      %s50 = int_to_ptr.vmem [resolvable:$true] %s49
      %55 = dma.hbm_to_vmem [thread:$0]  %s3, 2048, %s50, [#allocation9], 128, 128, 8
    $region17: #{layer_norm.1} parent=1 // pred_fallthru
      _
    // Predicated region
    $region18: #{layer_norm.1} parent=1 // pred_check
      _
    $region19: #{layer_norm.1} parent=1 // pred_check_branch
      %57 = sbr.rel (0) target = $region21
    $region20: #{layer_norm.1} parent=1 // pred_region
      %s59 = ssub.s32 64, 64
      %60 = vsyncadd [#allocation9], %s59
      %s62 = sshll.u32 [#allocation10], 4
      %s63 = int_to_ptr.vmem [resolvable:$true] %s62
      %65 = dma.hbm_to_vmem [thread:$0]  %s4, 64, %s63, [#allocation9]
    $region21: #{layer_norm.1} parent=1 // pred_fallthru
      _
    // Predicated region
    $region22: #{layer_norm.1} parent=1 // pred_check
      _
    $region23: #{layer_norm.1} parent=1 // pred_check_branch
      %67 = sbr.rel (0) target = $region25
    $region24: #{layer_norm.1} parent=1 // pred_region
      %68 = dma.done [#allocation3], 64
    $region25: #{layer_norm.1} parent=1 // pred_fallthru
      _
    // Predicated region
    $region26: #{layer_norm.1} parent=1 // pred_check
      _
    $region27: #{layer_norm.1} parent=1 // pred_check_branch
      %70 = sbr.rel (0) target = $region29
    $region28: #{layer_norm.1} parent=1 // pred_region
      %71 = dma.done [#allocation6], 16
    $region29: #{layer_norm.1} parent=1 // pred_fallthru
      _
    // Predicated region
    $region30: #{layer_norm.1} parent=1 // pred_check
      _
    $region31: #{layer_norm.1} parent=1 // pred_check_branch
      %73 = sbr.rel (0) target = $region33
    $region32: #{layer_norm.1} parent=1 // pred_region
      %74 = dma.done [#allocation6], 16
    $region33: #{layer_norm.1} parent=1 // pred_fallthru
      _
    // Predicated region
    $region34: #{layer_norm.1} parent=1 // pred_check
      _
    $region35: #{layer_norm.1} parent=1 // pred_check_branch
      %76 = sbr.rel (0) target = $region37
    $region36: #{layer_norm.1} parent=1 // pred_region
      %77 = dma.done [#allocation9], 2048
    $region37: #{layer_norm.1} parent=1 // pred_fallthru
      _
    // Predicated region
    $region38: #{layer_norm.1} parent=1 // pred_check
      _
    $region39: #{layer_norm.1} parent=1 // pred_check_branch
      %79 = sbr.rel (0) target = $region41
    $region40: #{layer_norm.1} parent=1 // pred_region
      %80 = dma.done [#allocation9], 64
    $region41: #{layer_norm.1} parent=1 // pred_fallthru
      _
    %v81 = vld [vmem:[#allocation2] sm:$0xf]
    %v82 = vld [vmem:[#allocation8] sm:$0xff]
    %v83 = vld [vmem:[#allocation8 + $0x8] sm:$0xff]
    %v84 = vld [vmem:[#allocation8 + $0x10] sm:$0xff]
    %v85 = vld [vmem:[#allocation8 + $0x18] sm:$0xff]
    %v86 = vld [vmem:[#allocation8 + $0x20] sm:$0xff]
    %v87 = vld [vmem:[#allocation8 + $0x28] sm:$0xff]
    %v88 = vld [vmem:[#allocation8 + $0x30] sm:$0xff]
    %v89 = vld [vmem:[#allocation8 + $0x38] sm:$0xff]
    %v90 = vld [vmem:[#allocation8 + $0x40] sm:$0xff]
    %v91 = vld [vmem:[#allocation8 + $0x48] sm:$0xff]
    %v92 = vld [vmem:[#allocation8 + $0x50] sm:$0xff]
    %v93 = vld [vmem:[#allocation8 + $0x58] sm:$0xff]
    %v94 = vld [vmem:[#allocation8 + $0x60] sm:$0xff]
    %v95 = vld [vmem:[#allocation8 + $0x68] sm:$0xff]
    %v96 = vld [vmem:[#allocation8 + $0x70] sm:$0xff]
    %v97 = vld [vmem:[#allocation8 + $0x78] sm:$0xff]
    %v98 = vld [vmem:[#allocation10] sm:$0xf]
    %99 = vmatprep.subr.mxu0 0.0
    %100 = vmatpush1.msra.mxu0 %v82
    %101 = vmatprep.subr.mxu0 0.0
    %102 = vmatpush1.msra.mxu0 %v83
    %103 = vmatprep.subr.mxu0 0.0
    %104 = vmatpush1.msra.mxu0 %v84
    %105 = vmatprep.subr.mxu0 0.0
    %106 = vmatpush1.msra.mxu0 %v85
    %107 = vmatprep.subr.mxu0 0.0
    %108 = vmatpush1.msra.mxu0 %v86
    %109 = vmatprep.subr.mxu0 0.0
    %110 = vmatpush1.msra.mxu0 %v87
    %111 = vmatprep.subr.mxu0 0.0
    %112 = vmatpush1.msra.mxu0 %v88
    %113 = vmatprep.subr.mxu0 0.0
    %114 = vmatpush1.msra.mxu0 %v89
    %115 = vmatprep.subr.mxu0 0.0
    %116 = vmatpush1.msra.mxu0 %v90
    %117 = vmatprep.subr.mxu0 0.0
    %118 = vmatpush1.msra.mxu0 %v91
    %119 = vmatprep.subr.mxu0 0.0
    %120 = vmatpush1.msra.mxu0 %v92
    %121 = vmatprep.subr.mxu0 0.0
    %122 = vmatpush1.msra.mxu0 %v93
    %123 = vmatprep.subr.mxu0 0.0
    %124 = vmatpush1.msra.mxu0 %v94
    %125 = vmatprep.subr.mxu0 0.0
    %126 = vmatpush1.msra.mxu0 %v95
    %127 = vmatprep.subr.mxu0 0.0
    %128 = vmatpush1.msra.mxu0 %v96
    %129 = vmatprep.subr.mxu0 0.0
    %130 = vmatpush1.msra.mxu0 %v97
    %131 = vmatprep.subr.mxu0 0.0
    %132 = vmatpush1.msra.mxu0 0.0
    %133 = vmatprep.subr.mxu0 0.0
    %134 = vmatpush1.msra.mxu0 0.0
    %135 = vmatprep.subr.mxu0 0.0
    %136 = vmatpush1.msra.mxu0 0.0
    %137 = vmatprep.subr.mxu0 0.0
    %138 = vmatpush1.msra.mxu0 0.0
    %139 = vmatprep.subr.mxu0 0.0
    %140 = vmatpush1.msra.mxu0 0.0
    %141 = vmatprep.subr.mxu0 0.0
    %142 = vmatpush1.msra.mxu0 0.0
    %143 = vmatprep.subr.mxu0 0.0
    %144 = vmatpush1.msra.mxu0 0.0
    %145 = vmatprep.subr.mxu0 0.0
    %146 = vmatpush1.msra.mxu0 0.0
    %147 = vmatprep.subr.mxu0 0.0
    %148 = vmatpush1.msra.mxu0 0.0
    %149 = vmatprep.subr.mxu0 0.0
    %150 = vmatpush1.msra.mxu0 0.0
    %151 = vmatprep.subr.mxu0 0.0
    %152 = vmatpush1.msra.mxu0 0.0
    %153 = vmatprep.subr.mxu0 0.0
    %154 = vmatpush1.msra.mxu0 0.0
    %155 = vmatprep.subr.mxu0 0.0
    %156 = vmatpush1.msra.mxu0 0.0
    %157 = vmatprep.subr.mxu0 0.0
    %158 = vmatpush1.msra.mxu0 0.0
    %159 = vmatprep.subr.mxu0 0.0
    %160 = vmatpush1.msra.mxu0 0.0
    %161 = vmatprep.subr.mxu0 0.0
    %162 = vmatpush1.msra.mxu0 0.0
    %163 = vmatprep.mubr.f32.mxu0 0.0
    %164 = vmatmul.mubr.f32.gmra.mrb[0].mxu0 %v81
    %v165 = vpop.f32.mrb[0].mxu0
    %v166 = vadd.f32 0.0, %v165
    %v167 = vpop.f32.mrb[0].mxu0
    %168 = vdwg.mxu0
    %v169 = vmul.f32 %v166, 0.03125
    %vm170 = vcmask 31744
    %v172 = vsel %vm170, %v169, 0
    %vm174 = vcmask 1043456
    %v176 = vsel %vm174, %v98, 0
    %178 = vmatprep.subr.mxu0 0.0
    %179 = vmatpush1.msra.mxu0 %v176
    %180 = vmatprep.subr.mxu0 0.0
    %181 = vmatpush1.msra.mxu0 0.0
    %182 = vmatprep.subr.mxu0 0.0
    %183 = vmatpush1.msra.mxu0 0.0
    %184 = vmatprep.subr.mxu0 0.0
    %185 = vmatpush1.msra.mxu0 0.0
    %186 = vmatprep.subr.mxu0 0.0
    %187 = vmatpush1.msra.mxu0 0.0
    %188 = vmatprep.subr.mxu0 0.0
    %189 = vmatpush1.msra.mxu0 0.0
    %190 = vmatprep.subr.mxu0 0.0
    %191 = vmatpush1.msra.mxu0 0.0
    %192 = vmatprep.subr.mxu0 0.0
    %193 = vmatpush1.msra.mxu0 0.0
    %194 = vmatprep.subr.mxu0 0.0
    %195 = vmatpush1.msra.mxu0 0.0
    %196 = vmatprep.subr.mxu0 0.0
    %197 = vmatpush1.msra.mxu0 0.0
    %198 = vmatprep.subr.mxu0 0.0
    %199 = vmatpush1.msra.mxu0 0.0
    %200 = vmatprep.subr.mxu0 0.0
    %201 = vmatpush1.msra.mxu0 0.0
    %202 = vmatprep.subr.mxu0 0.0
    %203 = vmatpush1.msra.mxu0 0.0
    %204 = vmatprep.subr.mxu0 0.0
    %205 = vmatpush1.msra.mxu0 0.0
    %206 = vmatprep.subr.mxu0 0.0
    %207 = vmatpush1.msra.mxu0 0.0
    %208 = vmatprep.subr.mxu0 0.0
    %209 = vmatpush1.msra.mxu0 0.0
    %210 = vmatprep.subr.mxu0 0.0
    %211 = vmatpush1.msra.mxu0 0.0
    %212 = vmatprep.subr.mxu0 0.0
    %213 = vmatpush1.msra.mxu0 0.0
    %214 = vmatprep.subr.mxu0 0.0
    %215 = vmatpush1.msra.mxu0 0.0
    %216 = vmatprep.subr.mxu0 0.0
    %217 = vmatpush1.msra.mxu0 0.0
    %218 = vmatprep.subr.mxu0 0.0
    %219 = vmatpush1.msra.mxu0 0.0
    %220 = vmatprep.subr.mxu0 0.0
    %221 = vmatpush1.msra.mxu0 0.0
    %222 = vmatprep.subr.mxu0 0.0
    %223 = vmatpush1.msra.mxu0 0.0
    %224 = vmatprep.subr.mxu0 0.0
    %225 = vmatpush1.msra.mxu0 0.0
    %226 = vmatprep.subr.mxu0 0.0
    %227 = vmatpush1.msra.mxu0 0.0
    %228 = vmatprep.subr.mxu0 0.0
    %229 = vmatpush1.msra.mxu0 0.0
    %230 = vmatprep.subr.mxu0 0.0
    %231 = vmatpush1.msra.mxu0 0.0
    %232 = vmatprep.subr.mxu0 0.0
    %233 = vmatpush1.msra.mxu0 0.0
    %234 = vmatprep.subr.mxu0 0.0
    %235 = vmatpush1.msra.mxu0 0.0
    %236 = vmatprep.subr.mxu0 0.0
    %237 = vmatpush1.msra.mxu0 0.0
    %238 = vmatprep.subr.mxu0 0.0
    %239 = vmatpush1.msra.mxu0 0.0
    %240 = vmatprep.subr.mxu0 0.0
    %241 = vmatpush1.msra.mxu0 0.0
    %242 = vmatprep.mubr.f32.mxu0 0.0
    %243 = vmatmul.mubr.f32.gmra.mrb[0].mxu0 %v172
    %v244 = vpop.f32.mrb[0].mxu0
    %v245 = vadd.f32 0.0, %v244
    %v246 = vpop.f32.mrb[0].mxu0
    %247 = vdwg.mxu0
    %v248 = vsub.f32 %v81, %v245
    %v249 = vmul.f32 %v248, %v248
    %250 = vmatprep.subr.mxu0 0.0
    %251 = vmatpush1.msra.mxu0 %v82
    %252 = vmatprep.subr.mxu0 0.0
    %253 = vmatpush1.msra.mxu0 %v83
    %254 = vmatprep.subr.mxu0 0.0
    %255 = vmatpush1.msra.mxu0 %v84
    %256 = vmatprep.subr.mxu0 0.0
    %257 = vmatpush1.msra.mxu0 %v85
    %258 = vmatprep.subr.mxu0 0.0
    %259 = vmatpush1.msra.mxu0 %v86
    %260 = vmatprep.subr.mxu0 0.0
    %261 = vmatpush1.msra.mxu0 %v87
    %262 = vmatprep.subr.mxu0 0.0
    %263 = vmatpush1.msra.mxu0 %v88
    %264 = vmatprep.subr.mxu0 0.0
    %265 = vmatpush1.msra.mxu0 %v89
    %266 = vmatprep.subr.mxu0 0.0
    %267 = vmatpush1.msra.mxu0 %v90
    %268 = vmatprep.subr.mxu0 0.0
    %269 = vmatpush1.msra.mxu0 %v91
    %270 = vmatprep.subr.mxu0 0.0
    %271 = vmatpush1.msra.mxu0 %v92
    %272 = vmatprep.subr.mxu0 0.0
    %273 = vmatpush1.msra.mxu0 %v93
    %274 = vmatprep.subr.mxu0 0.0
    %275 = vmatpush1.msra.mxu0 %v94
    %276 = vmatprep.subr.mxu0 0.0
    %277 = vmatpush1.msra.mxu0 %v95
    %278 = vmatprep.subr.mxu0 0.0
    %279 = vmatpush1.msra.mxu0 %v96
    %280 = vmatprep.subr.mxu0 0.0
    %281 = vmatpush1.msra.mxu0 %v97
    %282 = vmatprep.subr.mxu0 0.0
    %283 = vmatpush1.msra.mxu0 0.0
    %284 = vmatprep.subr.mxu0 0.0
    %285 = vmatpush1.msra.mxu0 0.0
    %286 = vmatprep.subr.mxu0 0.0
    %287 = vmatpush1.msra.mxu0 0.0
    %288 = vmatprep.subr.mxu0 0.0
    %289 = vmatpush1.msra.mxu0 0.0
    %290 = vmatprep.subr.mxu0 0.0
    %291 = vmatpush1.msra.mxu0 0.0
    %292 = vmatprep.subr.mxu0 0.0
    %293 = vmatpush1.msra.mxu0 0.0
    %294 = vmatprep.subr.mxu0 0.0
    %295 = vmatpush1.msra.mxu0 0.0
    %296 = vmatprep.subr.mxu0 0.0
    %297 = vmatpush1.msra.mxu0 0.0
    %298 = vmatprep.subr.mxu0 0.0
    %299 = vmatpush1.msra.mxu0 0.0
    %300 = vmatprep.subr.mxu0 0.0
    %301 = vmatpush1.msra.mxu0 0.0
    %302 = vmatprep.subr.mxu0 0.0
    %303 = vmatpush1.msra.mxu0 0.0
    %304 = vmatprep.subr.mxu0 0.0
    %305 = vmatpush1.msra.mxu0 0.0
    %306 = vmatprep.subr.mxu0 0.0
    %307 = vmatpush1.msra.mxu0 0.0
    %308 = vmatprep.subr.mxu0 0.0
    %309 = vmatpush1.msra.mxu0 0.0
    %310 = vmatprep.subr.mxu0 0.0
    %311 = vmatpush1.msra.mxu0 0.0
    %312 = vmatprep.subr.mxu0 0.0
    %313 = vmatpush1.msra.mxu0 0.0
    %314 = vmatprep.mubr.f32.mxu0 0.0
    %315 = vmatmul.mubr.f32.gmra.mrb[0].mxu0 %v249
    %v316 = vpop.f32.mrb[0].mxu0
    %v317 = vadd.f32 0.0, %v316
    %v318 = vpop.f32.mrb[0].mxu0
    %319 = vdwg.mxu0
    %v320 = vmul.f32 %v317, 0.03125
    %v321 = vadd.f32 %v320, 1e-05
    %v322 = vrsqrt.pop %v321
    %v324 = vsel %vm170, %v322, 0
    %326 = vmatprep.subr.mxu0 0.0
    %327 = vmatpush1.msra.mxu0 %v176
    %328 = vmatprep.subr.mxu0 0.0
    %329 = vmatpush1.msra.mxu0 0.0
    %330 = vmatprep.subr.mxu0 0.0
    %331 = vmatpush1.msra.mxu0 0.0
    %332 = vmatprep.subr.mxu0 0.0
    %333 = vmatpush1.msra.mxu0 0.0
    %334 = vmatprep.subr.mxu0 0.0
    %335 = vmatpush1.msra.mxu0 0.0
    %336 = vmatprep.subr.mxu0 0.0
    %337 = vmatpush1.msra.mxu0 0.0
    %338 = vmatprep.subr.mxu0 0.0
    %339 = vmatpush1.msra.mxu0 0.0
    %340 = vmatprep.subr.mxu0 0.0
    %341 = vmatpush1.msra.mxu0 0.0
    %342 = vmatprep.subr.mxu0 0.0
    %343 = vmatpush1.msra.mxu0 0.0
    %344 = vmatprep.subr.mxu0 0.0
    %345 = vmatpush1.msra.mxu0 0.0
    %346 = vmatprep.subr.mxu0 0.0
    %347 = vmatpush1.msra.mxu0 0.0
    %348 = vmatprep.subr.mxu0 0.0
    %349 = vmatpush1.msra.mxu0 0.0
    %350 = vmatprep.subr.mxu0 0.0
    %351 = vmatpush1.msra.mxu0 0.0
    %352 = vmatprep.subr.mxu0 0.0
    %353 = vmatpush1.msra.mxu0 0.0
    %354 = vmatprep.subr.mxu0 0.0
    %355 = vmatpush1.msra.mxu0 0.0
    %356 = vmatprep.subr.mxu0 0.0
    %357 = vmatpush1.msra.mxu0 0.0
    %358 = vmatprep.subr.mxu0 0.0
    %359 = vmatpush1.msra.mxu0 0.0
    %360 = vmatprep.subr.mxu0 0.0
    %361 = vmatpush1.msra.mxu0 0.0
    %362 = vmatprep.subr.mxu0 0.0
    %363 = vmatpush1.msra.mxu0 0.0
    %364 = vmatprep.subr.mxu0 0.0
    %365 = vmatpush1.msra.mxu0 0.0
    %366 = vmatprep.subr.mxu0 0.0
    %367 = vmatpush1.msra.mxu0 0.0
    %368 = vmatprep.subr.mxu0 0.0
    %369 = vmatpush1.msra.mxu0 0.0
    %370 = vmatprep.subr.mxu0 0.0
    %371 = vmatpush1.msra.mxu0 0.0
    %372 = vmatprep.subr.mxu0 0.0
    %373 = vmatpush1.msra.mxu0 0.0
    %374 = vmatprep.subr.mxu0 0.0
    %375 = vmatpush1.msra.mxu0 0.0
    %376 = vmatprep.subr.mxu0 0.0
    %377 = vmatpush1.msra.mxu0 0.0
    %378 = vmatprep.subr.mxu0 0.0
    %379 = vmatpush1.msra.mxu0 0.0
    %380 = vmatprep.subr.mxu0 0.0
    %381 = vmatpush1.msra.mxu0 0.0
    %382 = vmatprep.subr.mxu0 0.0
    %383 = vmatpush1.msra.mxu0 0.0
    %384 = vmatprep.subr.mxu0 0.0
    %385 = vmatpush1.msra.mxu0 0.0
    %386 = vmatprep.subr.mxu0 0.0
    %387 = vmatpush1.msra.mxu0 0.0
    %388 = vmatprep.subr.mxu0 0.0
    %389 = vmatpush1.msra.mxu0 0.0
    %390 = vmatprep.mubr.f32.mxu0 0.0
    %391 = vmatmul.mubr.f32.gmra.mrb[0].mxu0 %v324
    %v392 = vpop.f32.mrb[0].mxu0
    %v393 = vadd.f32 0.0, %v392
    %v394 = vpop.f32.mrb[0].mxu0
    %395 = vdwg.mxu0
    %v396 = vmul.f32 %v248, %v393
    %v397 = vld [vmem:[#allocation5] sm:$0x1]
    %v399 = vlaneseq
    %v400 = vshrl.u32 %v399, 7
    %v401 = vsub.s32 0, %v400
    %v402 = vrot.slane %v397, %v401
    %v404 = vmul.f32 %v396, %v402
    %v405 = vld [vmem:[#allocation7] sm:$0x1]
    %v407 = vlaneseq
    %v408 = vshrl.u32 %v407, 7
    %v409 = vsub.s32 0, %v408
    %v410 = vrot.slane %v405, %v409
    %v412 = vadd.f32 %v404, %v410
    %413 = vst [vmem:[#allocation11] sm:$0xf] %v412
    // Predicated region
    $region42: #{layer_norm.1} parent=1 // pred_check
      _
    $region43: #{layer_norm.1} parent=1 // pred_check_branch
      %415 = sbr.rel (0) target = $region45
    $region44: #{layer_norm.1} parent=1 // pred_region
      %s417 = ssub.s32 64, 64
      %418 = vsyncadd [#allocation4], %s417
      %s420 = sshll.u32 [#allocation11], 4
      %s421 = int_to_ptr.vmem [resolvable:$true] %s420
      %423 = dma.vmem_to_hbm [thread:$0]  %s421, 64, %s5, [#allocation4]
    $region45: #{layer_norm.1} parent=1 // pred_fallthru
      _
    // Predicated region
    $region46: #{layer_norm.1} parent=1 // pred_check
      _
    $region47: #{layer_norm.1} parent=1 // pred_check_branch
      %425 = sbr.rel (0) target = $region49
    $region48: #{layer_norm.1} parent=1 // pred_region
      %426 = dma.done [#allocation4], 64
    $region49: #{layer_norm.1} parent=1 // pred_fallthru
      _
    %427 = vsyncpa [#allocation3], 1
    %428 = vsyncpa [#allocation6], 1
    %429 = vsyncpa [#allocation9], 1
    %430 = vsyncpa [#allocation4], 1

</llo_original>
